<compile_context>
chip_gen: v6e
topology: v6e:2x2x1
jax: 0.10.0
libtpu: 0.0.40
codegen_flags: <defaults>
</compile_context>

<pallas_src>
import jax
import jax.numpy as jnp
from jax.experimental import pallas as pl
from jax.experimental.pallas import tpu as pltpu


def _acs_kernel(w_ref, in_ref, tgt_ref, out1_ref, out2_ref):
    # w_ref: SMEM f32[3] = pre-normalized (r, g, b) channel weights.
    # in_ref / tgt_ref: VMEM (1, 3, T) pixel tile; out*_ref: VMEM (1, 1, T).
    rw = w_ref[0]
    gw = w_ref[1]
    bw = w_ref[2]

    x = in_ref[0]   # (3, T)
    y = tgt_ref[0]  # (3, T)

    out1_ref[0] = rw * x[0:1, :] + gw * x[1:2, :] + bw * x[2:3, :]
    out2_ref[0] = rw * y[0:1, :] + gw * y[1:2, :] + bw * y[2:3, :]


def _pick_pixel_tile(hw, cap=131072):
    """Largest multiple-of-128 divisor of hw that is <= cap (~8 MiB of
    double-buffered VMEM at f32). Falls back to the full extent when hw is
    not 128-aligned (full-extent blocks are always legal)."""
    if hw % 128 != 0:
        return hw
    t = min(hw, (cap // 128) * 128)
    while hw % t != 0:
        t -= 128
    return t


def adaptive_color_shift(inp, tgt, weights):
    """inp, tgt: (B, 3, H, W) f32. weights: (3,) f32 clipped channel weights."""
    B, C, H, W = inp.shape
    assert C == 3
    HW = H * W

    # Fold the denominator into the weights once (no per-pixel divide).
    w_norm = (weights / jnp.sum(weights)).astype(jnp.float32)

    # Free reshape to a lane-dense layout: last axis = H*W pixels.
    inp_f = inp.reshape(B, 3, HW)
    tgt_f = tgt.reshape(B, 3, HW)

    T = _pick_pixel_tile(HW)
    n_tiles = HW // T

    grid_spec = pltpu.PrefetchScalarGridSpec(
        num_scalar_prefetch=1,            # weights -> SMEM
        grid=(B, n_tiles),
        in_specs=[
            pl.BlockSpec((1, 3, T), lambda b, p, w: (b, 0, p)),
            pl.BlockSpec((1, 3, T), lambda b, p, w: (b, 0, p)),
        ],
        out_specs=[
            pl.BlockSpec((1, 1, T), lambda b, p, w: (b, 0, p)),
            pl.BlockSpec((1, 1, T), lambda b, p, w: (b, 0, p)),
        ],
    )

    out1, out2 = pl.pallas_call(
        _acs_kernel,
        out_shape=(
            jax.ShapeDtypeStruct((B, 1, HW), inp.dtype),
            jax.ShapeDtypeStruct((B, 1, HW), tgt.dtype),
        ),
        grid_spec=grid_spec,
        compiler_params=pltpu.CompilerParams(
            dimension_semantics=("parallel", "parallel"),
        ),
    )(w_norm, inp_f, tgt_f)

    return out1.reshape(B, 1, H, W), out2.reshape(B, 1, H, W)


def make_weights(key, r_ratio, g_ratio, b_ratio):
    """Plain-JAX glue reproducing the module's random weight construction:
    w ~ U(0, 2), clipped to [1 - sigmoid(ratio), 1 + sigmoid(ratio)]."""
    s = jax.nn.sigmoid(jnp.array([r_ratio, g_ratio, b_ratio], jnp.float32))
    raw = jax.random.uniform(key, (3,), jnp.float32, minval=0.0, maxval=2.0)
    return jnp.clip(raw, 1.0 - s, 1.0 + s)


if __name__ == "__main__":
    key = jax.random.PRNGKey(0)
    k_in, k_tgt, k_w = jax.random.split(key, 3)

    B, C, H, W = 2, 3, 16, 16
    inp = jax.random.uniform(k_in, (B, C, H, W), jnp.float32)
    tgt = jax.random.uniform(k_tgt, (B, C, H, W), jnp.float32)

    # Deterministic parameter init, matching nn.Parameter(torch.tensor([0.5])).
    r_ratio = g_ratio = b_ratio = 0.5
    weights = make_weights(k_w, r_ratio, g_ratio, b_ratio)

    out1, out2 = adaptive_color_shift(inp, tgt, weights)
    jax.block_until_ready((out1, out2))

    # Reference check in plain JAX, using the module's original formula.
    rw, gw, bw = weights[0], weights[1], weights[2]
    denom = rw + gw + bw
    ref1 = (bw * inp[:, 2:3] + gw * inp[:, 1:2] + rw * inp[:, 0:1]) / denom
    ref2 = (bw * tgt[:, 2:3] + gw * tgt[:, 1:2] + rw * tgt[:, 0:1]) / denom
    assert jnp.allclose(out1, ref1, atol=1e-5)
    assert jnp.allclose(out2, ref2, atol=1e-5)

    print("KERNEL_OK")
</pallas_src>

<mosaic_0001>
module attributes {stable_mosaic.version = 11 : i64} {
  func.func @_acs_kernel(%arg0: i32, %arg1: i32, %arg2: memref<3xf32, #tpu.memory_space<smem>>, %arg3: memref<1x3x256xf32, #tpu.memory_space<vmem>>, %arg4: memref<1x3x256xf32, #tpu.memory_space<vmem>>, %arg5: memref<1x1x256xf32, #tpu.memory_space<vmem>>, %arg6: memref<1x1x256xf32, #tpu.memory_space<vmem>>) attributes {dimension_semantics = [#tpu.dimension_semantics<parallel>, #tpu.dimension_semantics<parallel>], iteration_bounds = array<i64: 2, 1>, scalar_prefetch = 1 : i64, scratch_operands = 0 : i64, tpu.core_type = #tpu.core_type<tc>, window_params = [{transform_indices = @transform_0, window_bounds = array<i64: 1, 3, 256>}, {transform_indices = @transform_1, window_bounds = array<i64: 1, 3, 256>}, {transform_indices = @transform_2, window_bounds = array<i64: 1, 1, 256>}, {transform_indices = @transform_3, window_bounds = array<i64: 1, 1, 256>}]} {
    %c0 = arith.constant 0 : index
    %0 = memref.load %arg2[%c0] : memref<3xf32, #tpu.memory_space<smem>>
    %c1 = arith.constant 1 : index
    %1 = memref.load %arg2[%c1] : memref<3xf32, #tpu.memory_space<smem>>
    %c2 = arith.constant 2 : index
    %2 = memref.load %arg2[%c2] : memref<3xf32, #tpu.memory_space<smem>>
    %c0_0 = arith.constant 0 : index
    %c0_1 = arith.constant 0 : index
    %c0_2 = arith.constant 0 : index
    %3 = vector.load %arg3[%c0_0, %c0_1, %c0_2] : memref<1x3x256xf32, #tpu.memory_space<vmem>>, vector<1x3x256xf32>
    %4 = vector.shape_cast %3 : vector<1x3x256xf32> to vector<3x256xf32>
    %c0_3 = arith.constant 0 : index
    %c0_4 = arith.constant 0 : index
    %c0_5 = arith.constant 0 : index
    %5 = vector.load %arg4[%c0_3, %c0_4, %c0_5] : memref<1x3x256xf32, #tpu.memory_space<vmem>>, vector<1x3x256xf32>
    %6 = vector.shape_cast %5 : vector<1x3x256xf32> to vector<3x256xf32>
    %7 = vector.extract_strided_slice %4 {offsets = [0, 0], sizes = [1, 256], strides = [1, 1]} : vector<3x256xf32> to vector<1x256xf32>
    %8 = vector.broadcast %0 : f32 to vector<1x256xf32>
    %9 = arith.mulf %8, %7 : vector<1x256xf32>
    %10 = vector.extract_strided_slice %4 {offsets = [1, 0], sizes = [1, 256], strides = [1, 1]} : vector<3x256xf32> to vector<1x256xf32>
    %11 = vector.broadcast %1 : f32 to vector<1x256xf32>
    %12 = arith.mulf %11, %10 : vector<1x256xf32>
    %13 = arith.addf %9, %12 : vector<1x256xf32>
    %14 = vector.extract_strided_slice %4 {offsets = [2, 0], sizes = [1, 256], strides = [1, 1]} : vector<3x256xf32> to vector<1x256xf32>
    %15 = vector.broadcast %2 : f32 to vector<1x256xf32>
    %16 = arith.mulf %15, %14 : vector<1x256xf32>
    %17 = arith.addf %13, %16 : vector<1x256xf32>
    %c0_6 = arith.constant 0 : index
    %c0_7 = arith.constant 0 : index
    %c0_8 = arith.constant 0 : index
    %18 = vector.load %arg5[%c0_6, %c0_7, %c0_8] : memref<1x1x256xf32, #tpu.memory_space<vmem>>, vector<1x1x256xf32>
    %19 = vector.shape_cast %18 : vector<1x1x256xf32> to vector<1x256xf32>
    %20 = vector.shape_cast %17 : vector<1x256xf32> to vector<1x1x256xf32>
    tpu.vector_store %arg5[%c0_6, %c0_7, %c0_8], %20 {strides = array<i32>} : memref<1x1x256xf32, #tpu.memory_space<vmem>>, vector<1x1x256xf32>,
    %21 = vector.extract_strided_slice %6 {offsets = [0, 0], sizes = [1, 256], strides = [1, 1]} : vector<3x256xf32> to vector<1x256xf32>
    %22 = vector.broadcast %0 : f32 to vector<1x256xf32>
    %23 = arith.mulf %22, %21 : vector<1x256xf32>
    %24 = vector.extract_strided_slice %6 {offsets = [1, 0], sizes = [1, 256], strides = [1, 1]} : vector<3x256xf32> to vector<1x256xf32>
    %25 = vector.broadcast %1 : f32 to vector<1x256xf32>
    %26 = arith.mulf %25, %24 : vector<1x256xf32>
    %27 = arith.addf %23, %26 : vector<1x256xf32>
    %28 = vector.extract_strided_slice %6 {offsets = [2, 0], sizes = [1, 256], strides = [1, 1]} : vector<3x256xf32> to vector<1x256xf32>
    %29 = vector.broadcast %2 : f32 to vector<1x256xf32>
    %30 = arith.mulf %29, %28 : vector<1x256xf32>
    %31 = arith.addf %27, %30 : vector<1x256xf32>
    %c0_9 = arith.constant 0 : index
    %c0_10 = arith.constant 0 : index
    %c0_11 = arith.constant 0 : index
    %32 = vector.load %arg6[%c0_9, %c0_10, %c0_11] : memref<1x1x256xf32, #tpu.memory_space<vmem>>, vector<1x1x256xf32>
    %33 = vector.shape_cast %32 : vector<1x1x256xf32> to vector<1x256xf32>
    %34 = vector.shape_cast %31 : vector<1x256xf32> to vector<1x1x256xf32>
    tpu.vector_store %arg6[%c0_9, %c0_10, %c0_11], %34 {strides = array<i32>} : memref<1x1x256xf32, #tpu.memory_space<vmem>>, vector<1x1x256xf32>,
    return
  }
  func.func @transform_0(%arg0: i32, %arg1: i32, %arg2: memref<3xf32, #tpu.memory_space<smem>>) -> (i32, i32, i32) {
    %c0_i32 = arith.constant 0 : i32
    %c0_i32_0 = arith.constant 0 : i32
    return %arg0, %c0_i32, %arg1 : i32, i32, i32
  }
  func.func @transform_1(%arg0: i32, %arg1: i32, %arg2: memref<3xf32, #tpu.memory_space<smem>>) -> (i32, i32, i32) {
    %c0_i32 = arith.constant 0 : i32
    %c0_i32_0 = arith.constant 0 : i32
    return %arg0, %c0_i32, %arg1 : i32, i32, i32
  }
  func.func @transform_2(%arg0: i32, %arg1: i32, %arg2: memref<3xf32, #tpu.memory_space<smem>>) -> (i32, i32, i32) {
    %c0_i32 = arith.constant 0 : i32
    %c0_i32_0 = arith.constant 0 : i32
    return %arg0, %c0_i32, %arg1 : i32, i32, i32
  }
  func.func @transform_3(%arg0: i32, %arg1: i32, %arg2: memref<3xf32, #tpu.memory_space<smem>>) -> (i32, i32, i32) {
    %c0_i32 = arith.constant 0 : i32
    %c0_i32_0 = arith.constant 0 : i32
    return %arg0, %c0_i32, %arg1 : i32, i32, i32
  }
}

</mosaic_0001>

<llo_original>
// kernel: tpu_custom_call.1
$region0: #{tpu_custom_call.1}
  #allocation0 [shape = 'u32[]', space=smem, size = 0x4, offset = 0x4, fixed_abs, tag = 'smem constant byte address 0x4 - core index']
  #allocation1 [shape = 'u32[144,128]{1,0:T(1,128)}', space=vmem, size = 0x12000, scoped, tag = 'internal scratch']
  #allocation2 [shape = 's32[1]{0}', space=sflag, size = 0x4, scoped, tag = 'scoped memory for tpu_custom_call.1']
  #allocation3 [shape = 'u8[512]{0}', space=smem, size = 0x200, scoped, tag = 'prefetched SMEM operand 0']
  %s0 = inlined_call_operand.vmem [shape: f32[3], index: 0, kind: input, shape index: {}]
  %s1 = inlined_call_operand.vmem [shape: f32[2,3,256], index: 1, kind: input, shape index: {}]
  %s2 = inlined_call_operand.vmem [shape: f32[2,3,256], index: 2, kind: input, shape index: {}]
  %s3 = inlined_call_operand.hbm [shape: f32[2,1,256], index: 3, kind: output, shape index: {0}]
  %s4 = inlined_call_operand.hbm [shape: f32[2,1,256], index: 4, kind: output, shape index: {1}]
  %5 = xla_tuple %s3, %s4
  %s6 = sld [smem:[#allocation0]]
  $region49: #{tpu_custom_call.1} parent=0
    _
  %s8 = ssub.s32 1, %s6
  %s9 = scalar_select 0, %s8, %s6
  %s10 = sshll.u32 %s0, 4
  %s11 = int_to_ptr.vmem [resolvable:$true] %s10
  %13 = dma.vmem_to_smem %s11, 16, [#allocation3], [#allocation2]
  %14 = dma.done [#allocation2], 16
  %15 = sfence
  $region1: #{tpu_custom_call.1} parent=0
    #allocation4 [shape = 'u8[2048]{0}', space=vmem, size = 0x800, scoped, tag = 'output window, operand 0']
    #allocation5 [shape = 's32[2]{0}', space=sflag, size = 0x8, scoped, tag = 'scoped memory for tpu_custom_call.1']
    #allocation6 [shape = 'u8[2048]{0}', space=vmem, size = 0x800, scoped, tag = 'output window, operand 1']
    #allocation7 [shape = 's32[2]{0}', space=sflag, size = 0x8, scoped, tag = 'scoped memory for tpu_custom_call.1']
    %16 = vsyncpa [#allocation5], 0
    %s17 = scalar_lea.sflag [#allocation5], 1
    %18 = vsyncpa %s17, 0
    %19 = vsyncpa [#allocation7], 0
    %s20 = scalar_lea.sflag [#allocation7], 1
    %21 = vsyncpa %s20, 0
    loop: start=0, step=1, limit=4
    $region2: #{tpu_custom_call.1} parent=1 // loop_pre_header
      _
    $region3: #{tpu_custom_call.1} parent=1 // loop_header
      %s23 = sphi 0, %s27
      %p24 = scmp.ge.s32.totalorder %s23, 4
      %s30 = sphi 0, %s42
      %s31 = sphi 0, %s38
      %s32 = sphi 0, %s30
      %s33 = sphi 0, %s31
      %s34 = sphi 0, %s32
      %s35 = sphi 0, %s33
      %s47 = sphi 0, %s49
      %s50 = sphi 0, %s47
      %s51 = sphi 0, %s50
      %s67 = sphi 0, %s51
      %s75 = sphi 0, %s77
      %s78 = sphi 0, %s75
      %s79 = sphi 0, %s78
      %s95 = sphi 0, %s79
      %s103 = sphi 0, %s105
      %s106 = sphi 0, %s103
      %s107 = sphi 0, %s106
      %s123 = sphi 0, %s107
      %s131 = sphi 0, %s133
      %s134 = sphi 0, %s131
      %s135 = sphi 0, %s134
      %s151 = sphi 0, %s135
    $region4: #{tpu_custom_call.1} parent=1 // loop_header_branch
      %26 = sbr.rel (%p24) target = $region8
    $region5: #{tpu_custom_call.1} parent=1 // loop_body
      %s28 = ssub.s32 %s23, 1
      %s29 = ssub.s32 %s23, 2
      %s36 = sadd.s32 1, %s31
      %p37 = scmp.ge.s32.totalorder %s36, 1
      %s38 = scalar_select %p37, 0, %s36
      %s39 = sadd.s32 1, %s30
      %s40 = scalar_select %p37, %s39, %s30
      %p41 = scmp.ge.s32.totalorder %s40, 2
      %s42 = scalar_select %p41, 0, %s40
      %s43 = ssub.s32 %s30, %s42
      %s44 = ssub.s32 %s31, %s38
      %s45 = sor.u32 %s43, %s44
      %p46 = scmp.eq.s32.totalorder %s45, 0
      %s48 = sadd.s32 %s47, 1
      %s49 = scalar_select %p46, %s47, %s48
      %p52 = pneg %p46
      %p53 = scmp.eq.s32.totalorder %s23, 1
      %p54 = por %p52, %p53
      %p55 = scmp.ne.s32.totalorder %s47, %s50
      %p56 = scmp.eq.s32.totalorder %s23, 0
      %p57 = por %p55, %p56
      %p58 = scmp.ne.s32.totalorder %s47, %s50
      %p59 = scmp.eq.s32.totalorder %s28, 1
      %p60 = por %p58, %p59
      %p61 = scmp.ne.s32.totalorder %s50, %s51
      %p62 = scmp.eq.s32.totalorder %s28, 0
      %p63 = por %p61, %p62
      %p64 = scmp.ne.s32.totalorder %s50, %s51
      %p65 = scmp.eq.s32.totalorder %s29, 1
      %p66 = por %p64, %p65
      %p68 = scmp.ne.s32.totalorder %s51, %s67
      %p69 = scmp.eq.s32.totalorder %s29, 0
      %p70 = por %p68, %p69
      %s71 = ssub.s32 %s30, %s42
      %s72 = ssub.s32 %s31, %s38
      %s73 = sor.u32 %s71, %s72
      %p74 = scmp.eq.s32.totalorder %s73, 0
      %s76 = sadd.s32 %s75, 1
      %s77 = scalar_select %p74, %s75, %s76
      %p80 = pneg %p74
      %p81 = scmp.eq.s32.totalorder %s23, 1
      %p82 = por %p80, %p81
      %p83 = scmp.ne.s32.totalorder %s75, %s78
      %p84 = scmp.eq.s32.totalorder %s23, 0
      %p85 = por %p83, %p84
      %p86 = scmp.ne.s32.totalorder %s75, %s78
      %p87 = scmp.eq.s32.totalorder %s28, 1
      %p88 = por %p86, %p87
      %p89 = scmp.ne.s32.totalorder %s78, %s79
      %p90 = scmp.eq.s32.totalorder %s28, 0
      %p91 = por %p89, %p90
      %p92 = scmp.ne.s32.totalorder %s78, %s79
      %p93 = scmp.eq.s32.totalorder %s29, 1
      %p94 = por %p92, %p93
      %p96 = scmp.ne.s32.totalorder %s79, %s95
      %p97 = scmp.eq.s32.totalorder %s29, 0
      %p98 = por %p96, %p97
      %s99 = ssub.s32 %s30, %s42
      %s100 = ssub.s32 %s31, %s38
      %s101 = sor.u32 %s99, %s100
      %p102 = scmp.eq.s32.totalorder %s101, 0
      %s104 = sadd.s32 %s103, 1
      %s105 = scalar_select %p102, %s103, %s104
      %p108 = pneg %p102
      %p109 = scmp.eq.s32.totalorder %s23, 1
      %p110 = por %p108, %p109
      %p111 = scmp.ne.s32.totalorder %s103, %s106
      %p112 = scmp.eq.s32.totalorder %s23, 0
      %p113 = por %p111, %p112
      %p114 = scmp.ne.s32.totalorder %s103, %s106
      %p115 = scmp.eq.s32.totalorder %s28, 1
      %p116 = por %p114, %p115
      %p117 = scmp.ne.s32.totalorder %s106, %s107
      %p118 = scmp.eq.s32.totalorder %s28, 0
      %p119 = por %p117, %p118
      %p120 = scmp.ne.s32.totalorder %s106, %s107
      %p121 = scmp.eq.s32.totalorder %s29, 1
      %p122 = por %p120, %p121
      %p124 = scmp.ne.s32.totalorder %s107, %s123
      %p125 = scmp.eq.s32.totalorder %s29, 0
      %p126 = por %p124, %p125
      %s127 = ssub.s32 %s30, %s42
      %s128 = ssub.s32 %s31, %s38
      %s129 = sor.u32 %s127, %s128
      %p130 = scmp.eq.s32.totalorder %s129, 0
      %s132 = sadd.s32 %s131, 1
      %s133 = scalar_select %p130, %s131, %s132
      %p136 = pneg %p130
      %p137 = scmp.eq.s32.totalorder %s23, 1
      %p138 = por %p136, %p137
      %p139 = scmp.ne.s32.totalorder %s131, %s134
      %p140 = scmp.eq.s32.totalorder %s23, 0
      %p141 = por %p139, %p140
      %p142 = scmp.ne.s32.totalorder %s131, %s134
      %p143 = scmp.eq.s32.totalorder %s28, 1
      %p144 = por %p142, %p143
      %p145 = scmp.ne.s32.totalorder %s134, %s135
      %p146 = scmp.eq.s32.totalorder %s28, 0
      %p147 = por %p145, %p146
      %p148 = scmp.ne.s32.totalorder %s134, %s135
      %p149 = scmp.eq.s32.totalorder %s29, 1
      %p150 = por %p148, %p149
      %p152 = scmp.ne.s32.totalorder %s135, %s151
      %p153 = scmp.eq.s32.totalorder %s29, 0
      %p154 = por %p152, %p153
      %p155 = scmp.le.s32.totalorder 1, %s23
      %p156 = scmp.lt.s32.totalorder %s23, 3
      %p157 = pnand %p155, %p156
      %p158 = pneg %p157
      // Predicated region
      $region9: #{tpu_custom_call.1} parent=5 // pred_check
        _
      $region10: #{tpu_custom_call.1} parent=5 // pred_check_branch
        %160 = sbr.rel (%p157) target = $region12
      $region11: #{tpu_custom_call.1} parent=5 // pred_region
        %s161 = ssub.s32 %s23, 1
      $region12: #{tpu_custom_call.1} parent=5 // pred_fallthru
        _
      %p162 = scmp.lt.s32.totalorder %s23, 2
      // Predicated region
      $region13: #{tpu_custom_call.1} parent=5 // pred_check
        %p163 = pneg %p162
      $region14: #{tpu_custom_call.1} parent=5 // pred_check_branch
        %165 = sbr.rel (%p163) target = $region16
      $region15: #{tpu_custom_call.1} parent=5 // pred_region
        // Predicated region
        $region17: #{tpu_custom_call.1} parent=15 // pred_check
          %p166 = pneg %p57
        $region18: #{tpu_custom_call.1} parent=15 // pred_check_branch
          %168 = sbr.rel (%p166) target = $region20
        $region19: #{tpu_custom_call.1} parent=15 // pred_region
          %s169 = smul.u32 2, %s31
          %p170 = scmp.lt.s32.totalorder %s30, 1
          %s171 = scalar_select %p170, %s30, 1
          %p172 = scmp.lt.s32.totalorder %s169, 1
          %s173 = scalar_select %p172, %s169, 1
          %s174 = smul.addr %s171, 2
          %s175 = sadd.s32 %s173, %s174
          %s176 = smul.addr %s175, 4
          %s177 = scalar_lea.vmem %s1, %s176
          %s178 = smul.u32 2, %s31
        $region20: #{tpu_custom_call.1} parent=15 // pred_fallthru
          _
        // Predicated region
        $region21: #{tpu_custom_call.1} parent=15 // pred_check
          %p179 = pneg %p85
        $region22: #{tpu_custom_call.1} parent=15 // pred_check_branch
          %181 = sbr.rel (%p179) target = $region24
        $region23: #{tpu_custom_call.1} parent=15 // pred_region
          %s182 = smul.u32 2, %s31
          %p183 = scmp.lt.s32.totalorder %s30, 1
          %s184 = scalar_select %p183, %s30, 1
          %p185 = scmp.lt.s32.totalorder %s182, 1
          %s186 = scalar_select %p185, %s182, 1
          %s187 = smul.addr %s184, 2
          %s188 = sadd.s32 %s186, %s187
          %s189 = smul.addr %s188, 4
          %s190 = scalar_lea.vmem %s2, %s189
          %s191 = smul.u32 2, %s31
        $region24: #{tpu_custom_call.1} parent=15 // pred_fallthru
          _
      $region16: #{tpu_custom_call.1} parent=5 // pred_fallthru
        _
      %p192 = scmp.le.s32.totalorder 1, %s23
      %p193 = scmp.lt.s32.totalorder %s23, 3
      %p194 = pnand %p192, %p193
      %p195 = pneg %p194
      // Predicated region
      $region25: #{tpu_custom_call.1} parent=5 // pred_check
        _
      $region26: #{tpu_custom_call.1} parent=5 // pred_check_branch
        %197 = sbr.rel (%p194) target = $region28
      $region27: #{tpu_custom_call.1} parent=5 // pred_region
        %s198 = ssub.s32 %s23, 1
        %s199 = smul.u32 2, %s33
        %p200 = scmp.lt.s32.totalorder %s32, 1
        %s201 = scalar_select %p200, %s32, 1
        %p202 = scmp.lt.s32.totalorder %s199, 1
        %s203 = scalar_select %p202, %s199, 1
        %s204 = smul.addr %s201, 2
        %s205 = sadd.s32 %s203, %s204
        %s206 = smul.addr %s205, 4
        %s207 = scalar_lea.vmem %s1, %s206
        %p208 = pneg %p63
        %p209 = pneg %p60
        %s210 = smul.u32 2, %s33
        %p211 = scmp.lt.s32.totalorder %s32, 1
        %s212 = scalar_select %p211, %s32, 1
        %p213 = scmp.lt.s32.totalorder %s210, 1
        %s214 = scalar_select %p213, %s210, 1
        %s215 = smul.addr %s212, 2
        %s216 = sadd.s32 %s214, %s215
        %s217 = smul.addr %s216, 4
        %s218 = scalar_lea.vmem %s2, %s217
        %p219 = pneg %p91
        %p220 = pneg %p88
        %p221 = pneg %p119
        %p222 = pneg %p116
        %s223 = sand.u32 %s106, 1
        %s224 = scalar_lea.sflag [#allocation5], %s223
        %s225 = sand.u32 %s106, 1
        %s226 = smul.addr %s225, 2
        %s227 = scalar_lea.vmem [#allocation4], %s226
        %p228 = pneg %p147
        %p229 = pneg %p144
        %s230 = sand.u32 %s134, 1
        %s231 = scalar_lea.sflag [#allocation7], %s230
        %s232 = sand.u32 %s134, 1
        %s233 = smul.addr %s232, 2
        %s234 = scalar_lea.vmem [#allocation6], %s233
        %s235 = smul.u32 2, %s33
        %p236 = scmp.lt.s32.totalorder %s32, 1
        %s237 = scalar_select %p236, %s32, 1
        %p238 = scmp.lt.s32.totalorder %s235, 1
        %s239 = scalar_select %p238, %s235, 1
        %s240 = smul.addr %s237, 2
        %s241 = sadd.s32 %s239, %s240
        %s242 = smul.addr %s241, 4
        %s243 = scalar_lea.vmem %s1, %s242
        %s244 = smul.u32 2, %s33
        %s245 = smul.u32 2, %s33
        %p246 = scmp.lt.s32.totalorder %s32, 1
        %s247 = scalar_select %p246, %s32, 1
        %p248 = scmp.lt.s32.totalorder %s245, 1
        %s249 = scalar_select %p248, %s245, 1
        %s250 = smul.addr %s247, 2
        %s251 = sadd.s32 %s249, %s250
        %s252 = smul.addr %s251, 4
        %s253 = scalar_lea.vmem %s2, %s252
        %s254 = smul.u32 2, %s33
        %s255 = smul.u32 2, %s33
        %s256 = smul.u32 2, %s33
        %s257 = sld [smem:[#allocation3]]
        %s258 = sld [smem:[#allocation3 + $0x1]]
        %s259 = sld [smem:[#allocation3 + $0x2]]
        %v260 = vld [vmem:[%s243] sm:$0x77]
        %v261 = vld [vmem:[%s253] sm:$0x77]
        %v262 = vstv %s257
        %v263 = vmul.f32 %v262, %v260
        %v264 = vstv %s258
        %v265 = vmul.f32 %v264, %v260
        %v267 = vrot.slane %v265, 5
        %v268 = vrot.slane %v267, 4
        %v270 = vadd.f32 %v263, %v268
        %v271 = vstv %s259
        %v272 = vmul.f32 %v271, %v260
        %v274 = vrot.slane %v272, 6
        %v275 = vrot.slane %v274, 4
        %v277 = vadd.f32 %v270, %v275
        %v280 = vunpack.c.l.s4 1966171168
        %v281 = vunpack.c.0.s8 %v280
        %v282 = vlaneseq
        %v283 = vshrl.u32 %v282, 7
        %v284 = vsub.s32 %v281, %v283
        %v285 = vrot.slane %v277, %v284
        %v287 = vunpack.c.l.s4 1966171168
        %v288 = vunpack.c.0.s8 %v287
        %v289 = vlaneseq
        %v290 = vshrl.u32 %v289, 7
        %v291 = vsub.s32 %v288, %v290
        %v292 = vrot.slane %v285, %v291
        %v294 = vlaneseq
        %vm295 = vcmp.ge.s32.totalorder %v294, 0
        %vm296 = vcmp.lt.s32.totalorder %v294, 256
        %vm297 = vmand %vm295, %vm296
        %298 = vst.msk [vmem:[%s227] sm:$0x3] %vm297, %v292
        %v299 = vmul.f32 %v262, %v261
        %v300 = vmul.f32 %v264, %v261
        %v302 = vrot.slane %v300, 5
        %v303 = vrot.slane %v302, 4
        %v305 = vadd.f32 %v299, %v303
        %v306 = vmul.f32 %v271, %v261
        %v308 = vrot.slane %v306, 6
        %v309 = vrot.slane %v308, 4
        %v311 = vadd.f32 %v305, %v309
        %v314 = vunpack.c.l.s4 1966171168
        %v315 = vunpack.c.0.s8 %v314
        %v316 = vlaneseq
        %v317 = vshrl.u32 %v316, 7
        %v318 = vsub.s32 %v315, %v317
        %v319 = vrot.slane %v311, %v318
        %v321 = vunpack.c.l.s4 1966171168
        %v322 = vunpack.c.0.s8 %v321
        %v323 = vlaneseq
        %v324 = vshrl.u32 %v323, 7
        %v325 = vsub.s32 %v322, %v324
        %v326 = vrot.slane %v319, %v325
        %328 = vst.msk [vmem:[%s234] sm:$0x3] %vm297, %v326
        %s329 = sand.u32 %s106, 1
        %s330 = scalar_lea.sflag [#allocation5], %s329
        %s331 = sand.u32 %s106, 1
        %s332 = smul.addr %s331, 2
        %s333 = scalar_lea.vmem [#allocation4], %s332
        %s334 = sand.u32 %s134, 1
        %s335 = scalar_lea.sflag [#allocation7], %s334
        %s336 = sand.u32 %s134, 1
        %s337 = smul.addr %s336, 2
        %s338 = scalar_lea.vmem [#allocation6], %s337
        // Predicated region
        $region29: #{tpu_custom_call.1} parent=27 // pred_check
          %p339 = pneg %p116
        $region30: #{tpu_custom_call.1} parent=27 // pred_check_branch
          %341 = sbr.rel (%p339) target = $region32
        $region31: #{tpu_custom_call.1} parent=27 // pred_region
          %s342 = smul.u32 2, %s33
          %s344 = ssub.s32 32, 32
          %345 = vsyncadd %s330, %s344
          %s346 = smul.addr %s32, 2
          %s347 = sadd.s32 %s342, %s346
          %s348 = smul.addr %s347, 16
          %s349 = scalar_lea.hbm %s3, %s348
          %s351 = sshll.u32 %s333, 4
          %s352 = int_to_ptr.vmem [resolvable:$true] %s351
          %354 = dma.vmem_to_hbm [thread:$0]  %s352, 32, %s349, %s330
        $region32: #{tpu_custom_call.1} parent=27 // pred_fallthru
          _
        // Predicated region
        $region33: #{tpu_custom_call.1} parent=27 // pred_check
          %p355 = pneg %p144
        $region34: #{tpu_custom_call.1} parent=27 // pred_check_branch
          %357 = sbr.rel (%p355) target = $region36
        $region35: #{tpu_custom_call.1} parent=27 // pred_region
          %s358 = smul.u32 2, %s33
          %s360 = ssub.s32 32, 32
          %361 = vsyncadd %s335, %s360
          %s362 = smul.addr %s32, 2
          %s363 = sadd.s32 %s358, %s362
          %s364 = smul.addr %s363, 16
          %s365 = scalar_lea.hbm %s4, %s364
          %s367 = sshll.u32 %s338, 4
          %s368 = int_to_ptr.vmem [resolvable:$true] %s367
          %370 = dma.vmem_to_hbm [thread:$0]  %s368, 32, %s365, %s335
        $region36: #{tpu_custom_call.1} parent=27 // pred_fallthru
          _
      $region28: #{tpu_custom_call.1} parent=5 // pred_fallthru
        _
      %p371 = scmp.le.s32.totalorder 2, %s23
      // Predicated region
      $region37: #{tpu_custom_call.1} parent=5 // pred_check
        %p372 = pneg %p371
      $region38: #{tpu_custom_call.1} parent=5 // pred_check_branch
        %374 = sbr.rel (%p372) target = $region40
      $region39: #{tpu_custom_call.1} parent=5 // pred_region
        %s375 = ssub.s32 %s23, 2
        // Predicated region
        $region41: #{tpu_custom_call.1} parent=39 // pred_check
          %p376 = pneg %p122
        $region42: #{tpu_custom_call.1} parent=39 // pred_check_branch
          %378 = sbr.rel (%p376) target = $region44
        $region43: #{tpu_custom_call.1} parent=39 // pred_region
          %s379 = sand.u32 %s107, 1
          %s380 = scalar_lea.sflag [#allocation5], %s379
          %s381 = sand.u32 %s107, 1
          %s382 = smul.addr %s381, 2
          %s383 = scalar_lea.vmem [#allocation4], %s382
          %384 = dma.done %s380, 32
        $region44: #{tpu_custom_call.1} parent=39 // pred_fallthru
          _
        // Predicated region
        $region45: #{tpu_custom_call.1} parent=39 // pred_check
          %p385 = pneg %p150
        $region46: #{tpu_custom_call.1} parent=39 // pred_check_branch
          %387 = sbr.rel (%p385) target = $region48
        $region47: #{tpu_custom_call.1} parent=39 // pred_region
          %s388 = sand.u32 %s135, 1
          %s389 = scalar_lea.sflag [#allocation7], %s388
          %s390 = sand.u32 %s135, 1
          %s391 = smul.addr %s390, 2
          %s392 = scalar_lea.vmem [#allocation6], %s391
          %393 = dma.done %s389, 32
        $region48: #{tpu_custom_call.1} parent=39 // pred_fallthru
          _
      $region40: #{tpu_custom_call.1} parent=5 // pred_fallthru
        _
    $region6: #{tpu_custom_call.1} parent=1 // loop_footer
      %s27 = sadd.s32 1, %s23
    $region7: #{tpu_custom_call.1} parent=1 // loop_footer_branch
      %22 = sbr.rel target = $region3
    $region8: #{tpu_custom_call.1} parent=1 // loop_exit
      _
    %394 = vsyncpa [#allocation5], 1
    %s395 = scalar_lea.sflag [#allocation5], 1
    %396 = vsyncpa %s395, 1
    %397 = vsyncpa [#allocation7], 1
    %s398 = scalar_lea.sflag [#allocation7], 1
    %399 = vsyncpa %s398, 1

</llo_original>
